<compile_context>
chip_gen: v7x
topology: tpu7x:2x2x1
jax: 0.10.0
libtpu: 0.0.40
codegen_flags: <defaults>
</compile_context>

<pallas_src>
import functools

import jax
import jax.numpy as jnp
from jax.experimental import pallas as pl
from jax.experimental.pallas import tpu as pltpu


def _detected_tensorcores():
    """Best-effort TensorCores-per-chip query; None if unknown."""
    try:
        info = pltpu.get_tpu_info()
        for name in ("num_cores", "core_count", "num_tensorcores",
                     "tensorcore_count", "cores_per_chip"):
            v = getattr(info, name, None)
            if isinstance(v, int) and v >= 1:
                return v
    except Exception:
        pass
    return None


def _pct_loss_kernel(o_ref, t_ref, out_ref, acc_ref, *,
                     tm, lane, blocks_per_core, valid_rows, need_mask,
                     acc_rows, use_approx_reciprocal):
    c = pl.program_id(0)   # core / partial-sum index ("parallel")
    i = pl.program_id(1)   # row-block index within this core ("arbitrary")

    @pl.when(i == 0)
    def _init():
        acc_ref[...] = jnp.zeros_like(acc_ref)

    o = o_ref[...].astype(jnp.float32)
    t = t_ref[...].astype(jnp.float32)

    if use_approx_reciprocal:
        # EUP-slot reciprocal: frees VALU slots (useful on v7x / bf16 inputs),
        # ~2^-12 per-element relative error vs the exact divide.
        rel = jnp.abs(t - o) * pl.reciprocal(t, approx=True)
    else:
        rel = jnp.abs(t - o) / t

    def _accumulate(x):
        # Pure vreg adds into an (8,128) accumulator; the cross-sublane /
        # cross-lane collapse happens only once, in the finalize branch.
        if acc_rows == 8:
            if tm == 8:
                acc_ref[...] += x
            else:
                acc_ref[...] += jnp.sum(x.reshape(tm // 8, 8, lane), axis=0)
        else:
            acc_ref[...] += jnp.sum(x, axis=0, keepdims=True)

    if need_mask:
        # Only tail / clamped-duplicate blocks pay the mask cost; full blocks
        # take the branch below with zero extra per-element VPU work.
        row_start = (c * blocks_per_core + i) * tm
        is_full = row_start + tm <= valid_rows

        @pl.when(is_full)
        def _full_block():
            _accumulate(rel)

        @pl.when(jnp.logical_not(is_full))
        def _tail_block():
            # select (not multiply) so garbage rows (Inf/NaN from stale VMEM
            # in partial blocks) are dropped, never propagated.
            global_row = row_start + jax.lax.broadcasted_iota(
                jnp.int32, rel.shape, 0)
            _accumulate(jnp.where(global_row < valid_rows, rel, 0.0))
    else:
        _accumulate(rel)

    @pl.when(i == pl.num_programs(1) - 1)
    def _finalize():
        out_ref[...] = jnp.sum(acc_ref[...], keepdims=True)


def pct_loss(output, target, *, block_bytes=4 << 20, tm_max=None,
             use_approx_reciprocal=False, ncores=None):
    """Equivalent of torch.mean(torch.abs(target - output) / target)."""
    assert output.shape == target.shape
    lane = 128
    n = output.size

    flat_o = output.reshape(-1)
    flat_t = target.reshape(-1)

    o_item = output.dtype.itemsize
    t_item = target.dtype.itemsize

    # ---- <128-element tail: plain jnp in the wrapper (no padding copies). --
    n_main = (n // lane) * lane
    total = jnp.zeros((), jnp.float32)
    if n_main < n:
        tail_o = flat_o[n_main:].astype(jnp.float32)
        tail_t = flat_t[n_main:].astype(jnp.float32)
        total = total + jnp.sum(jnp.abs(tail_t - tail_o) / tail_t)

    if n_main > 0:
        total_rows = n_main // lane
        # Zero-copy reshape when n % 128 == 0 (the common case).
        o2 = flat_o[:n_main].reshape(total_rows, lane)
        t2 = flat_t[:n_main].reshape(total_rows, lane)

        # ---- tile selection (dtype aware) --------------------------------
        if tm_max is None:
            # ~4 MiB block per input: tm=8192 (f32) / 16384 (bf16).
            tm_max = max(8, block_bytes // (lane * max(o_item, t_item)))
        # Minimum sublane multiple for the narrower dtype (f32:8, bf16:16).
        sub = max(8, 32 // min(o_item, t_item))
        if total_rows <= tm_max:
            tm = total_rows          # single block == full array dims: legal
        else:
            tm = max(sub, (tm_max // sub) * sub)

        total_blocks = pl.cdiv(total_rows, tm)

        # ---- core split (multi-TC chips) ---------------------------------
        detected = _detected_tensorcores()
        if ncores is None:
            # Default 2-way partial-sum split: ~2x DMA bandwidth on multi-TC
            # chips, a harmless serial loop on 1-TC chips; collapse to 1 when
            # the chip is positively identified as single-core.
            ncores = detected if detected is not None else 2
        ncores = max(1, min(ncores, total_blocks))
        bpc = pl.cdiv(total_blocks, ncores)
        need_mask = (ncores * bpc * tm != total_rows)
        max_block = total_blocks - 1   # clamp: no DMA ever fully out of bounds

        acc_rows = 8 if tm % 8 == 0 else 1

        def in_map(c, i):
            return (jnp.minimum(c * bpc + i, max_block), 0)

        kernel = functools.partial(
            _pct_loss_kernel,
            tm=tm,
            lane=lane,
            blocks_per_core=bpc,
            valid_rows=total_rows,
            need_mask=need_mask,
            acc_rows=acc_rows,
            use_approx_reciprocal=use_approx_reciprocal,
        )

        # Double-buffered VMEM footprint for both inputs + accumulator.
        footprint = 2 * tm * lane * (o_item + t_item) + acc_rows * lane * 4
        vmem_limit = max(32 << 20, footprint + (4 << 20))

        if detected is not None and detected >= 2 and ncores >= 2:
            dim_sem = (pltpu.CORE_PARALLEL, pltpu.ARBITRARY)
        else:
            dim_sem = ("parallel", "arbitrary")

        partial_sums = pl.pallas_call(
            kernel,
            out_shape=jax.ShapeDtypeStruct((ncores, 1), jnp.float32),
            grid_spec=pltpu.PrefetchScalarGridSpec(
                num_scalar_prefetch=0,
                grid=(ncores, bpc),
                in_specs=[
                    pl.BlockSpec((tm, lane), in_map),
                    pl.BlockSpec((tm, lane), in_map),
                ],
                out_specs=pl.BlockSpec((1, 1), lambda c, i: (c, 0)),
                scratch_shapes=[pltpu.VMEM((acc_rows, lane), jnp.float32)],
            ),
            compiler_params=pltpu.CompilerParams(
                dimension_semantics=dim_sem,
                vmem_limit_bytes=vmem_limit,
            ),
        )(o2, t2)

        total = total + jnp.sum(partial_sums)

    return total / n


def _ref_loss(output, target):
    o = output.astype(jnp.float32)
    t = target.astype(jnp.float32)
    return jnp.mean(jnp.abs(t - o) / t)


if __name__ == "__main__":
    key = jax.random.PRNGKey(0)
    keys = jax.random.split(key, 10)

    def mk(k, shape, dtype=jnp.float32):
        # Keep values away from zero so the divide is benign (same semantics
        # as the PyTorch module otherwise: zero targets -> inf/nan).
        return jax.random.uniform(k, shape, jnp.float32,
                                  minval=0.5, maxval=1.5).astype(dtype)

    # Case 1: typical NCHW pair, n % 128 == 0 -> zero-copy single-block path.
    shape1 = (2, 4, 16, 16)
    o1, t1 = mk(keys[0], shape1), mk(keys[1], shape1)
    l1 = jax.block_until_ready(pct_loss(o1, t1))
    assert jnp.allclose(l1, _ref_loss(o1, t1), rtol=1e-5, atol=1e-6), l1

    # Case 2: unaligned n (1155) -> jnp tail + single partial block;
    # then with tm_max=8 -> genuinely partial last row-block + 2-way split.
    shape2 = (3, 5, 7, 11)
    o2, t2 = mk(keys[2], shape2), mk(keys[3], shape2)
    l2a = jax.block_until_ready(pct_loss(o2, t2))
    l2b = jax.block_until_ready(pct_loss(o2, t2, tm_max=8))
    r2 = _ref_loss(o2, t2)
    assert jnp.allclose(l2a, r2, rtol=1e-5, atol=1e-6), (l2a, r2)
    assert jnp.allclose(l2b, r2, rtol=1e-5, atol=1e-6), (l2b, r2)

    # Case 3: multi-block + clamped-duplicate mask path (2 cores, bpc=2,
    # 3 real blocks) with the (8,128) accumulator.
    shape3 = (3, 4, 16, 16)
    o3, t3 = mk(keys[4], shape3), mk(keys[5], shape3)
    l3 = jax.block_until_ready(pct_loss(o3, t3, tm_max=8))
    assert jnp.allclose(l3, _ref_loss(o3, t3), rtol=1e-5, atol=1e-6), l3

    # Case 4: bf16 inputs, tm a multiple of 16, 2 blocks, no mask.
    shape4 = (2, 16, 128)
    o4, t4 = mk(keys[6], shape4, jnp.bfloat16), mk(keys[7], shape4, jnp.bfloat16)
    l4 = jax.block_until_ready(pct_loss(o4, t4, tm_max=16))
    assert jnp.allclose(l4, _ref_loss(o4, t4), rtol=1e-5, atol=1e-6), l4

    # Case 5: n < 128 -> pure-jnp wrapper path (no pallas_call).
    shape5 = (5, 7)
    o5, t5 = mk(keys[8], shape5), mk(keys[9], shape5)
    l5 = jax.block_until_ready(pct_loss(o5, t5))
    assert jnp.allclose(l5, _ref_loss(o5, t5), rtol=1e-5, atol=1e-6), l5

    print("KERNEL_OK")
</pallas_src>

<mosaic_0001>
module attributes {stable_mosaic.version = 11 : i64} {
  func.func @_pct_loss_kernel(%arg0: i32, %arg1: i32, %arg2: memref<16x128xf32, #tpu.memory_space<vmem>>, %arg3: memref<16x128xf32, #tpu.memory_space<vmem>>, %arg4: memref<1x1xf32, #tpu.memory_space<vmem>>, %arg5: memref<8x128xf32, #tpu.memory_space<vmem>>) attributes {dimension_semantics = [#tpu.dimension_semantics<parallel>, #tpu.dimension_semantics<arbitrary>], iteration_bounds = array<i64: 1, 1>, scalar_prefetch = 0 : i64, scratch_operands = 1 : i64, tpu.core_type = #tpu.core_type<tc>, window_params = [{transform_indices = @transform_0, window_bounds = array<i64: 16, 128>}, {transform_indices = @transform_1, window_bounds = array<i64: 16, 128>}, {transform_indices = @transform_2, window_bounds = array<i64: 1, 1>}]} {
    %c0_i32 = arith.constant 0 : i32
    %0 = arith.cmpi eq, %arg1, %c0_i32 : i32
    %1 = arith.extui %0 : i1 to i32
    %c0_i32_0 = arith.constant 0 : i32
    %2 = arith.cmpi ne, %1, %c0_i32_0 : i32
    scf.if %2 {
      %cst_10 = arith.constant 0.000000e+00 : f32
      %16 = vector.broadcast %cst_10 : f32 to vector<8x128xf32>
      %c0_11 = arith.constant 0 : index
      %c0_12 = arith.constant 0 : index
      %17 = vector.load %arg5[%c0_11, %c0_12] : memref<8x128xf32, #tpu.memory_space<vmem>>, vector<8x128xf32>
      tpu.vector_store %arg5[%c0_11, %c0_12], %16 {strides = array<i32>} : memref<8x128xf32, #tpu.memory_space<vmem>>, vector<8x128xf32>,
    } else {
    }
    %c0 = arith.constant 0 : index
    %c0_1 = arith.constant 0 : index
    %3 = vector.load %arg2[%c0, %c0_1] : memref<16x128xf32, #tpu.memory_space<vmem>>, vector<16x128xf32>
    %c0_2 = arith.constant 0 : index
    %c0_3 = arith.constant 0 : index
    %4 = vector.load %arg3[%c0_2, %c0_3] : memref<16x128xf32, #tpu.memory_space<vmem>>, vector<16x128xf32>
    %5 = arith.subf %4, %3 : vector<16x128xf32>
    %6 = math.absf %5 : vector<16x128xf32>
    %7 = arith.divf %6, %4 : vector<16x128xf32>
    %c0_4 = arith.constant 0 : index
    %c0_5 = arith.constant 0 : index
    %8 = vector.load %arg5[%c0_4, %c0_5] : memref<8x128xf32, #tpu.memory_space<vmem>>, vector<8x128xf32>
    %9 = vector.shape_cast %7 : vector<16x128xf32> to vector<2x8x128xf32>
    %cst = arith.constant dense<0.000000e+00> : vector<8x128xf32>
    %10 = vector.multi_reduction <add>, %9, %cst [0] : vector<2x8x128xf32> to vector<8x128xf32>
    %11 = arith.addf %8, %10 : vector<8x128xf32>
    %c0_6 = arith.constant 0 : index
    %c0_7 = arith.constant 0 : index
    %12 = vector.load %arg5[%c0_6, %c0_7] : memref<8x128xf32, #tpu.memory_space<vmem>>, vector<8x128xf32>
    tpu.vector_store %arg5[%c0_6, %c0_7], %11 {strides = array<i32>} : memref<8x128xf32, #tpu.memory_space<vmem>>, vector<8x128xf32>,
    %c0_i32_8 = arith.constant 0 : i32
    %13 = arith.cmpi eq, %arg1, %c0_i32_8 : i32
    %14 = arith.extui %13 : i1 to i32
    %c0_i32_9 = arith.constant 0 : i32
    %15 = arith.cmpi ne, %14, %c0_i32_9 : i32
    scf.if %15 {
      %c0_10 = arith.constant 0 : index
      %c0_11 = arith.constant 0 : index
      %16 = vector.load %arg5[%c0_10, %c0_11] : memref<8x128xf32, #tpu.memory_space<vmem>>, vector<8x128xf32>
      %17 = vector.shape_cast %16 : vector<8x128xf32> to vector<1x8x128xf32>
      %cst_12 = arith.constant dense<0.000000e+00> : vector<1xf32>
      %18 = vector.multi_reduction <add>, %17, %cst_12 [1, 2] : vector<1x8x128xf32> to vector<1xf32>
      %19 = vector.shape_cast %18 : vector<1xf32> to vector<1x1x1xf32>
      %20 = vector.extract %19[0, 0, 0] : f32 from vector<1x1x1xf32>
      %21 = vector.broadcast %20 : f32 to vector<1x1xf32>
      %c0_13 = arith.constant 0 : index
      %c0_14 = arith.constant 0 : index
      %22 = vector.load %arg4[%c0_13, %c0_14] : memref<1x1xf32, #tpu.memory_space<vmem>>, vector<1x1xf32>
      tpu.vector_store %arg4[%c0_13, %c0_14], %21 {strides = array<i32>} : memref<1x1xf32, #tpu.memory_space<vmem>>, vector<1x1xf32>,
    } else {
    }
    return
  }
  func.func @transform_0(%arg0: i32, %arg1: i32) -> (i32, i32) {
    %c1_i32 = arith.constant 1 : i32
    %0 = arith.muli %arg0, %c1_i32 : i32
    %1 = arith.addi %0, %arg1 : i32
    %c0_i32 = arith.constant 0 : i32
    %2 = arith.minsi %1, %c0_i32 : i32
    %c0_i32_0 = arith.constant 0 : i32
    %c0_i32_1 = arith.constant 0 : i32
    return %2, %c0_i32_0 : i32, i32
  }
  func.func @transform_1(%arg0: i32, %arg1: i32) -> (i32, i32) {
    %c1_i32 = arith.constant 1 : i32
    %0 = arith.muli %arg0, %c1_i32 : i32
    %1 = arith.addi %0, %arg1 : i32
    %c0_i32 = arith.constant 0 : i32
    %2 = arith.minsi %1, %c0_i32 : i32
    %c0_i32_0 = arith.constant 0 : i32
    %c0_i32_1 = arith.constant 0 : i32
    return %2, %c0_i32_0 : i32, i32
  }
  func.func @transform_2(%arg0: i32, %arg1: i32) -> (i32, i32) {
    %c0_i32 = arith.constant 0 : i32
    %c0_i32_0 = arith.constant 0 : i32
    return %arg0, %c0_i32 : i32, i32
  }
}

</mosaic_0001>

<llo_original>
// kernel: tpu_custom_call.1
$region0: #{tpu_custom_call.1}
  #allocation0 [shape = 'u32[]', space=smem, size = 0x4, offset = 0x4, fixed_abs, tag = 'smem constant byte address 0x4 - core index']
  #allocation1 [shape = 'u32[144,128]{1,0:T(1,128)}', space=vmem, size = 0x12000, scoped, tag = 'internal scratch']
  #allocation2 [shape = 'f32[8,128]{1,0:T(8,128)}', space=vmem, size = 0x1000, scoped, tag = 'scratch operand']
  %s0 = inlined_call_operand.hbm [shape: f32[16,128], index: 0, kind: input, shape index: {}]
  %s1 = inlined_call_operand.hbm [shape: f32[16,128], index: 1, kind: input, shape index: {}]
  %s2 = inlined_call_operand.hbm [shape: f32[1,1], index: 2, kind: output, shape index: {}]
  %s3 = sld [smem:[#allocation0]]
  $region34: #{tpu_custom_call.1} parent=0
    _
  %s5 = ssub.s32 1, %s3
  %s6 = scalar_select 0, %s5, %s3
  $region1: #{tpu_custom_call.1} parent=0
    #allocation3 [shape = 'u8[8192]{0}', space=vmem, size = 0x2000, scoped, tag = 'input window, operand 0, single buffered']
    #allocation4 [shape = 's32[1]{0}', space=sflag, size = 0x4, scoped, tag = 'scoped memory for tpu_custom_call.1']
    #allocation5 [shape = 's32[1]{0}', space=sflag, size = 0x4, scoped, tag = 'scoped memory for tpu_custom_call.1']
    #allocation6 [shape = 'u8[8192]{0}', space=vmem, size = 0x2000, scoped, tag = 'input window, operand 1, single buffered']
    #allocation7 [shape = 's32[1]{0}', space=sflag, size = 0x4, scoped, tag = 'scoped memory for tpu_custom_call.1']
    #allocation8 [shape = 'u8[512]{0}', space=vmem, size = 0x400, scoped, tag = 'output window, operand 0, single buffered']
    %7 = vsyncpa [#allocation4], 0
    %8 = vsyncpa [#allocation7], 0
    %9 = vsyncpa [#allocation5], 0
    // Predicated region
    $region2: #{tpu_custom_call.1} parent=1 // pred_check
      _
    $region3: #{tpu_custom_call.1} parent=1 // pred_check_branch
      %11 = sbr.rel (0) target = $region5
    $region4: #{tpu_custom_call.1} parent=1 // pred_region
      %s12 = sadd.s32 0, 0
      %p13 = scmp.lt.s32.totalorder %s12, 0
      %s14 = scalar_select %p13, %s12, 0
      %s15 = smul.u32 2, %s14
      %s17 = ssub.s32 256, 256
      %18 = vsyncadd [#allocation4], %s17
      %s19 = smul.addr %s15, 128
      %s20 = scalar_lea.hbm %s0, %s19
      %s21 = sshll.u32 [#allocation3], 4
      %s22 = int_to_ptr.vmem [resolvable:$true] %s21
      %27 = dma.hbm_to_vmem [thread:$0]  %s20, 256, %s22, [#allocation4], 128, 128, 8
    $region5: #{tpu_custom_call.1} parent=1 // pred_fallthru
      _
    // Predicated region
    $region6: #{tpu_custom_call.1} parent=1 // pred_check
      _
    $region7: #{tpu_custom_call.1} parent=1 // pred_check_branch
      %29 = sbr.rel (0) target = $region9
    $region8: #{tpu_custom_call.1} parent=1 // pred_region
      %s30 = sadd.s32 0, 0
      %p31 = scmp.lt.s32.totalorder %s30, 0
      %s32 = scalar_select %p31, %s30, 0
      %s33 = smul.u32 2, %s32
      %s35 = ssub.s32 256, 256
      %36 = vsyncadd [#allocation7], %s35
      %s37 = smul.addr %s33, 128
      %s38 = scalar_lea.hbm %s1, %s37
      %s39 = sshll.u32 [#allocation6], 4
      %s40 = int_to_ptr.vmem [resolvable:$true] %s39
      %45 = dma.hbm_to_vmem [thread:$0]  %s38, 256, %s40, [#allocation7], 128, 128, 8
    $region9: #{tpu_custom_call.1} parent=1 // pred_fallthru
      _
    // Predicated region
    $region10: #{tpu_custom_call.1} parent=1 // pred_check
      _
    $region11: #{tpu_custom_call.1} parent=1 // pred_check_branch
      %47 = sbr.rel (0) target = $region13
    $region12: #{tpu_custom_call.1} parent=1 // pred_region
      %48 = dma.done [#allocation4], 256
    $region13: #{tpu_custom_call.1} parent=1 // pred_fallthru
      _
    // Predicated region
    $region14: #{tpu_custom_call.1} parent=1 // pred_check
      _
    $region15: #{tpu_custom_call.1} parent=1 // pred_check_branch
      %50 = sbr.rel (0) target = $region17
    $region16: #{tpu_custom_call.1} parent=1 // pred_region
      %51 = dma.done [#allocation7], 256
    $region17: #{tpu_custom_call.1} parent=1 // pred_fallthru
      _
    %s52 = sadd.s32 0, 0
    %p53 = scmp.lt.s32.totalorder %s52, 0
    %s54 = scalar_select %p53, %s52, 0
    %s55 = smul.u32 2, %s54
    %s56 = sadd.s32 0, 0
    %p57 = scmp.lt.s32.totalorder %s56, 0
    %s58 = scalar_select %p57, %s56, 0
    %s59 = smul.u32 2, %s58
    %p60 = scmp.eq.s32.totalorder 0, 0
    // Predicated region
    $region18: #{tpu_custom_call.1} parent=1 // pred_check
      %p61 = pneg %p60
    $region19: #{tpu_custom_call.1} parent=1 // pred_check_branch
      %63 = sbr.rel (%p61) target = $region21
    $region20: #{tpu_custom_call.1} parent=1 // pred_region
      %64 = vst [vmem:[#allocation2] sm:$0xff] 0.0
    $region21: #{tpu_custom_call.1} parent=1 // pred_fallthru
      _
    %v65 = vld [vmem:[#allocation3] sm:$0xff]
    %v66 = vld [vmem:[#allocation3 + $0x8] sm:$0xff]
    %v67 = vld [vmem:[#allocation6] sm:$0xff]
    %v68 = vld [vmem:[#allocation6 + $0x8] sm:$0xff]
    %v69 = vsub.f32 %v67, %v65
    %v70 = vsub.f32 %v68, %v66
    %v71 = vand.u32 2147483647, %v69
    %v72 = vand.u32 2147483647, %v70
    %v73 = vrcp.pop %v67
    %v74 = vmul.f32 %v71, %v73
    %v75 = vrcp.pop %v68
    %v76 = vmul.f32 %v72, %v75
    %v77 = vld [vmem:[#allocation2] sm:$0xff]
    %v78 = vadd.f32 %v74, %v76
    %v79 = vadd.f32 %v77, %v78
    %80 = vst [vmem:[#allocation2] sm:$0xff] %v79
    // Predicated region
    $region22: #{tpu_custom_call.1} parent=1 // pred_check
      %p81 = pneg %p60
    $region23: #{tpu_custom_call.1} parent=1 // pred_check_branch
      %83 = sbr.rel (%p81) target = $region25
    $region24: #{tpu_custom_call.1} parent=1 // pred_region
      %v84 = vld [vmem:[#allocation2] sm:$0xff]
      %85 = vadd.xlane.f32.xlu0 %v84
      %v86 = vpop.xlane.xlu0 %85
      %v87 = vrot.slane %v86, 4
      %v88 = vadd.f32 %v86, %v87
      %v89 = vrot.slane %v88, 2
      %v90 = vadd.f32 %v88, %v89
      %v91 = vrot.slane %v90, 1
      %v92 = vadd.f32 %v90, %v91
      %s93 = vtos %v92
      %v94 = vstv %s93
      %vm95 = vcmask 0
      %96 = vst.msk [vmem:[#allocation8] sm:$0x1] %vm95, %v94
    $region25: #{tpu_custom_call.1} parent=1 // pred_fallthru
      _
    // Predicated region
    $region26: #{tpu_custom_call.1} parent=1 // pred_check
      _
    $region27: #{tpu_custom_call.1} parent=1 // pred_check_branch
      %98 = sbr.rel (0) target = $region29
    $region28: #{tpu_custom_call.1} parent=1 // pred_region
      %s100 = ssub.s32 16, 16
      %101 = vsyncadd [#allocation5], %s100
      %s103 = sshll.u32 [#allocation8], 4
      %s104 = int_to_ptr.vmem [resolvable:$true] %s103
      %106 = dma.vmem_to_hbm [thread:$0]  %s104, 16, %s2, [#allocation5]
    $region29: #{tpu_custom_call.1} parent=1 // pred_fallthru
      _
    // Predicated region
    $region30: #{tpu_custom_call.1} parent=1 // pred_check
      _
    $region31: #{tpu_custom_call.1} parent=1 // pred_check_branch
      %108 = sbr.rel (0) target = $region33
    $region32: #{tpu_custom_call.1} parent=1 // pred_region
      %109 = dma.done [#allocation5], 16
    $region33: #{tpu_custom_call.1} parent=1 // pred_fallthru
      _
    %110 = vsyncpa [#allocation4], 1
    %111 = vsyncpa [#allocation7], 1
    %112 = vsyncpa [#allocation5], 1

</llo_original>
